<compile_context>
chip_gen: v7x
topology: tpu7x:2x2x1
jax: 0.10.0
libtpu: 0.0.40
codegen_flags: <defaults>
</compile_context>

<pallas_src>
import math
from functools import partial

import jax
import jax.numpy as jnp
from jax.experimental import pallas as pl
from jax.experimental.pallas import tpu as pltpu


# ----------------------------------------------------------------------------
# pe buffer construction (plain JAX glue, deterministic)
# ----------------------------------------------------------------------------
def make_pe(d_model: int, max_len: int = 200) -> jnp.ndarray:
    position = jnp.arange(0, max_len, dtype=jnp.float32)[:, None]              # (L, 1)
    div_term = jnp.exp(jnp.arange(0, d_model, 2, dtype=jnp.float32)
                       * (-math.log(10000.0) / d_model))                        # (D/2,)
    pe = jnp.zeros((max_len, d_model), dtype=jnp.float32)
    pe = pe.at[:, 0::2].set(jnp.sin(position * div_term))
    pe = pe.at[:, 1::2].set(jnp.cos(position * div_term))
    # .unsqueeze(0).transpose(0, 1) -> (max_len, 1, d_model)
    return pe[:, None, :]


# ----------------------------------------------------------------------------
# Pallas kernel: out = dropout(x + pe_rows)   (one (TS, B, D) tile per grid step)
# ----------------------------------------------------------------------------
def _pos_enc_kernel(seed_ref, x_ref, pe_ref, o_ref, *,
                    p: float, training: bool, ts: int, B: int, D: int):
    x = x_ref[...]                               # (ts, B, D)
    y = x + pe_ref[...].astype(x.dtype)          # broadcast add over batch axis

    if training and p > 0.0:
        # Portable counter-based RNG: splitmix32 hash of (seed, global element
        # index), then an integer threshold compare (inverted dropout).
        shape = y.shape
        r = jax.lax.broadcasted_iota(jnp.int32, shape, 0)
        b = jax.lax.broadcasted_iota(jnp.int32, shape, 1)
        d = jax.lax.broadcasted_iota(jnp.int32, shape, 2)
        row = pl.program_id(0) * ts + r                       # global sequence row
        idx = ((row * B + b) * D + d).astype(jnp.uint32)      # global element index
        bits = idx + seed_ref[0].astype(jnp.uint32) * jnp.uint32(0x9E3779B9)
        bits = (bits ^ (bits >> 16)) * jnp.uint32(0x7FEB352D)
        bits = (bits ^ (bits >> 15)) * jnp.uint32(0x846CA68B)
        bits = bits ^ (bits >> 16)
        thresh = jnp.uint32(min(0xFFFFFFFF, int(round(p * 4294967296.0))))
        keep = bits >= thresh                                  # P(keep) = 1 - p
        scale = jnp.asarray(1.0 / (1.0 - p), dtype=y.dtype)
        y = jnp.where(keep, y * scale, jnp.zeros_like(y))

    o_ref[...] = y.astype(o_ref.dtype)


# ----------------------------------------------------------------------------
# Wrapper
# ----------------------------------------------------------------------------
def positional_encoding(x, pe, *, p: float = 0.1, training: bool = False, seed: int = 0):
    """x: (S, B, D); pe: (max_len, 1, D) with max_len >= S."""
    S, B, D = x.shape
    itemsize = jnp.dtype(x.dtype).itemsize

    # Tile many sequence rows per grid step: target ~2 MiB per x tile (well under
    # the 32 MiB scoped-VMEM default even with double-buffered in/out + pe tile),
    # but keep at least 2 blocks so the "parallel" grid axis can use both v7x TCs.
    target_bytes = 2 << 20
    row_bytes = max(1, B * D * itemsize)
    ts = max(1, min(S, target_bytes // row_bytes))
    if ts >= S and S > 1:
        ts = int(pl.cdiv(S, 2))
    ts = int(ts)
    n_blocks = int(pl.cdiv(S, ts))

    seed_arr = jnp.array([seed], dtype=jnp.int32)
    kernel = partial(_pos_enc_kernel, p=float(p), training=bool(training),
                     ts=ts, B=B, D=D)

    return pl.pallas_call(
        kernel,
        out_shape=jax.ShapeDtypeStruct((S, B, D), x.dtype),
        grid=(n_blocks,),
        in_specs=[
            pl.BlockSpec(memory_space=pltpu.MemorySpace.SMEM),          # seed scalar
            pl.BlockSpec((ts, B, D), lambda i: (i, 0, 0)),              # x tile
            pl.BlockSpec((ts, 1, D), lambda i: (i, 0, 0)),              # pe rows (from full buffer)
        ],
        out_specs=pl.BlockSpec((ts, B, D), lambda i: (i, 0, 0)),
        compiler_params=pltpu.CompilerParams(
            dimension_semantics=("parallel",),
            vmem_limit_bytes=48 * 1024 * 1024,
        ),
    )(seed_arr, x, pe)


if __name__ == "__main__":
    S, B, D = 8, 2, 32  # seq_len, batch, d_model (small demo shapes)
    key = jax.random.PRNGKey(0)
    x = jax.random.normal(key, (S, B, D), dtype=jnp.float32)

    pe = make_pe(d_model=D, max_len=200)

    # Eval-mode forward (dropout is identity), matches module.eval() semantics.
    out = jax.block_until_ready(positional_encoding(x, pe, p=0.1, training=False))
    ref = x + pe[:S]
    assert out.shape == (S, B, D)
    assert jnp.allclose(out, ref, atol=1e-6), "mismatch vs reference (eval mode)"

    # Training-mode forward (inverted dropout via in-kernel hashed threshold).
    out_train = jax.block_until_ready(
        positional_encoding(x, pe, p=0.1, training=True, seed=1234)
    )
    assert out_train.shape == (S, B, D)
    # Every surviving element must equal (x + pe) / (1 - p).
    scaled = ref / (1.0 - 0.1)
    mask = out_train != 0
    assert bool(jnp.all(jnp.where(mask, jnp.abs(out_train - scaled), 0.0) < 1e-5)), \
        "training-mode values are not correctly scaled"

    # TODO(synk): for d_model < 128 a lane-dense (S, B*D) layout would avoid masked
    # stores; real transformer configs (D % 128 == 0) are already lane-dense here.
    print("KERNEL_OK")
</pallas_src>

<mosaic_0001>
module attributes {stable_mosaic.version = 11 : i64} {
  func.func @_pos_enc_kernel(%arg0: i32, %arg1: memref<1xi32, #tpu.memory_space<smem>>, %arg2: memref<4x2x32xf32, #tpu.memory_space<vmem>>, %arg3: memref<4x1x32xf32, #tpu.memory_space<vmem>>, %arg4: memref<4x2x32xf32, #tpu.memory_space<vmem>>) attributes {dimension_semantics = [#tpu.dimension_semantics<parallel>], iteration_bounds = array<i64: 2>, scalar_prefetch = 0 : i64, scratch_operands = 0 : i64, tpu.core_type = #tpu.core_type<tc>, window_params = [{transform_indices = @transform_0, window_bounds = array<i64: 1>}, {transform_indices = @transform_1, window_bounds = array<i64: 4, 2, 32>}, {transform_indices = @transform_2, window_bounds = array<i64: 4, 1, 32>}, {transform_indices = @transform_3, window_bounds = array<i64: 4, 2, 32>}]} {
    %c0 = arith.constant 0 : index
    %c0_0 = arith.constant 0 : index
    %c0_1 = arith.constant 0 : index
    %0 = vector.load %arg2[%c0, %c0_0, %c0_1] : memref<4x2x32xf32, #tpu.memory_space<vmem>>, vector<4x2x32xf32>
    %c0_2 = arith.constant 0 : index
    %c0_3 = arith.constant 0 : index
    %c0_4 = arith.constant 0 : index
    %1 = vector.load %arg3[%c0_2, %c0_3, %c0_4] : memref<4x1x32xf32, #tpu.memory_space<vmem>>, vector<4x1x32xf32>
    %2 = vector.broadcast %1 : vector<4x1x32xf32> to vector<4x2x32xf32>
    %3 = arith.addf %0, %2 : vector<4x2x32xf32>
    %c0_5 = arith.constant 0 : index
    %c0_6 = arith.constant 0 : index
    %c0_7 = arith.constant 0 : index
    %4 = vector.load %arg4[%c0_5, %c0_6, %c0_7] : memref<4x2x32xf32, #tpu.memory_space<vmem>>, vector<4x2x32xf32>
    tpu.vector_store %arg4[%c0_5, %c0_6, %c0_7], %3 {strides = array<i32>} : memref<4x2x32xf32, #tpu.memory_space<vmem>>, vector<4x2x32xf32>,
    return
  }
  func.func @transform_0(%arg0: i32) -> i32 {
    %c0_i32 = arith.constant 0 : i32
    %c0_i32_0 = arith.constant 0 : i32
    return %c0_i32 : i32
  }
  func.func @transform_1(%arg0: i32) -> (i32, i32, i32) {
    %c0_i32 = arith.constant 0 : i32
    %c0_i32_0 = arith.constant 0 : i32
    %c0_i32_1 = arith.constant 0 : i32
    return %arg0, %c0_i32, %c0_i32_0 : i32, i32, i32
  }
  func.func @transform_2(%arg0: i32) -> (i32, i32, i32) {
    %c0_i32 = arith.constant 0 : i32
    %c0_i32_0 = arith.constant 0 : i32
    %c0_i32_1 = arith.constant 0 : i32
    return %arg0, %c0_i32, %c0_i32_0 : i32, i32, i32
  }
  func.func @transform_3(%arg0: i32) -> (i32, i32, i32) {
    %c0_i32 = arith.constant 0 : i32
    %c0_i32_0 = arith.constant 0 : i32
    %c0_i32_1 = arith.constant 0 : i32
    return %arg0, %c0_i32, %c0_i32_0 : i32, i32, i32
  }
}

</mosaic_0001>

<llo_original>
// kernel: tpu_custom_call.1
$region0: #{tpu_custom_call.1}
  #allocation0 [shape = 'u32[]', space=smem, size = 0x4, offset = 0x4, fixed_abs, tag = 'smem constant byte address 0x4 - core index']
  #allocation1 [shape = 'u32[144,128]{1,0:T(1,128)}', space=vmem, size = 0x12000, scoped, tag = 'internal scratch']
  #allocation2 [shape = 's32[1]{0:T(128)S(6)}', space=smem, size = 0x200, scoped, tag = 'scoped memory for tpu_custom_call.1']
  %s0 = inlined_call_operand.<no memory space> [shape: s32[1], index: 0, kind: input, shape index: {}]
  %s1 = inlined_call_operand.vmem [shape: f32[8,2,32], index: 1, kind: input, shape index: {}]
  %s2 = inlined_call_operand.vmem [shape: f32[200,1,32], index: 2, kind: input, shape index: {}]
  %s3 = inlined_call_operand.hbm [shape: f32[8,2,32], index: 3, kind: output, shape index: {}]
  %s4 = sld [smem:[#allocation0]]
  $region45: #{tpu_custom_call.1} parent=0
    _
  %s6 = ssub.s32 1, %s4
  %s7 = scalar_select 0, %s6, %s4
  %8 = sst [smem:[#allocation2]] %s0
  $region1: #{tpu_custom_call.1} parent=0
    #allocation3 [shape = 'u8[8192]{0}', space=vmem, size = 0x2000, scoped, tag = 'output window, operand 0']
    #allocation4 [shape = 's32[2]{0}', space=sflag, size = 0x8, scoped, tag = 'scoped memory for tpu_custom_call.1']
    %9 = vsyncpa [#allocation4], 0
    %s10 = scalar_lea.sflag [#allocation4], 1
    %11 = vsyncpa %s10, 0
    loop: start=0, step=1, limit=4
    $region2: #{tpu_custom_call.1} parent=1 // loop_pre_header
      _
    $region3: #{tpu_custom_call.1} parent=1 // loop_header
      %s13 = sphi 0, %s17
      %p14 = scmp.ge.s32.totalorder %s13, 4
      %s21 = sphi 0, %s21
      %s23 = sphi 0, %s21
      %s24 = sphi 0, %s23
      %s38 = sphi 0, %s24
      %s44 = sphi 0, %s46
      %s47 = sphi 0, %s44
      %s48 = sphi 0, %s47
      %s64 = sphi 0, %s48
      %s70 = sphi 0, %s72
      %s73 = sphi 0, %s70
      %s74 = sphi 0, %s73
      %s90 = sphi 0, %s74
      %s96 = sphi 0, %s98
      %s99 = sphi 0, %s96
      %s100 = sphi 0, %s99
      %s116 = sphi 0, %s100
    $region4: #{tpu_custom_call.1} parent=1 // loop_header_branch
      %16 = sbr.rel (%p14) target = $region8
    $region5: #{tpu_custom_call.1} parent=1 // loop_body
      %s18 = ssub.s32 %s13, 1
      %s19 = ssub.s32 %s13, 2
      %s20 = sadd.s32 %s13, 1
      %s22 = sadd.s32 %s21, 1
      %p25 = scmp.eq.s32.totalorder %s13, 1
      %p26 = scmp.ne.s32.totalorder %s21, %s23
      %p27 = scmp.eq.s32.totalorder %s13, 0
      %p28 = por %p26, %p27
      %p29 = scmp.ne.s32.totalorder %s21, %s23
      %p30 = scmp.eq.s32.totalorder %s18, 1
      %p31 = por %p29, %p30
      %p32 = scmp.ne.s32.totalorder %s23, %s24
      %p33 = scmp.eq.s32.totalorder %s18, 0
      %p34 = por %p32, %p33
      %p35 = scmp.ne.s32.totalorder %s23, %s24
      %p36 = scmp.eq.s32.totalorder %s19, 1
      %p37 = por %p35, %p36
      %p39 = scmp.ne.s32.totalorder %s24, %s38
      %p40 = scmp.eq.s32.totalorder %s19, 0
      %p41 = por %p39, %p40
      %s42 = ssub.s32 %s13, %s20
      %p43 = scmp.eq.s32.totalorder %s42, 0
      %s45 = sadd.s32 %s44, 1
      %s46 = scalar_select %p43, %s44, %s45
      %p49 = pneg %p43
      %p50 = scmp.eq.s32.totalorder %s13, 1
      %p51 = por %p49, %p50
      %p52 = scmp.ne.s32.totalorder %s44, %s47
      %p53 = scmp.eq.s32.totalorder %s13, 0
      %p54 = por %p52, %p53
      %p55 = scmp.ne.s32.totalorder %s44, %s47
      %p56 = scmp.eq.s32.totalorder %s18, 1
      %p57 = por %p55, %p56
      %p58 = scmp.ne.s32.totalorder %s47, %s48
      %p59 = scmp.eq.s32.totalorder %s18, 0
      %p60 = por %p58, %p59
      %p61 = scmp.ne.s32.totalorder %s47, %s48
      %p62 = scmp.eq.s32.totalorder %s19, 1
      %p63 = por %p61, %p62
      %p65 = scmp.ne.s32.totalorder %s48, %s64
      %p66 = scmp.eq.s32.totalorder %s19, 0
      %p67 = por %p65, %p66
      %s68 = ssub.s32 %s13, %s20
      %p69 = scmp.eq.s32.totalorder %s68, 0
      %s71 = sadd.s32 %s70, 1
      %s72 = scalar_select %p69, %s70, %s71
      %p75 = pneg %p69
      %p76 = scmp.eq.s32.totalorder %s13, 1
      %p77 = por %p75, %p76
      %p78 = scmp.ne.s32.totalorder %s70, %s73
      %p79 = scmp.eq.s32.totalorder %s13, 0
      %p80 = por %p78, %p79
      %p81 = scmp.ne.s32.totalorder %s70, %s73
      %p82 = scmp.eq.s32.totalorder %s18, 1
      %p83 = por %p81, %p82
      %p84 = scmp.ne.s32.totalorder %s73, %s74
      %p85 = scmp.eq.s32.totalorder %s18, 0
      %p86 = por %p84, %p85
      %p87 = scmp.ne.s32.totalorder %s73, %s74
      %p88 = scmp.eq.s32.totalorder %s19, 1
      %p89 = por %p87, %p88
      %p91 = scmp.ne.s32.totalorder %s74, %s90
      %p92 = scmp.eq.s32.totalorder %s19, 0
      %p93 = por %p91, %p92
      %s94 = ssub.s32 %s13, %s20
      %p95 = scmp.eq.s32.totalorder %s94, 0
      %s97 = sadd.s32 %s96, 1
      %s98 = scalar_select %p95, %s96, %s97
      %p101 = pneg %p95
      %p102 = scmp.eq.s32.totalorder %s13, 1
      %p103 = por %p101, %p102
      %p104 = scmp.ne.s32.totalorder %s96, %s99
      %p105 = scmp.eq.s32.totalorder %s13, 0
      %p106 = por %p104, %p105
      %p107 = scmp.ne.s32.totalorder %s96, %s99
      %p108 = scmp.eq.s32.totalorder %s18, 1
      %p109 = por %p107, %p108
      %p110 = scmp.ne.s32.totalorder %s99, %s100
      %p111 = scmp.eq.s32.totalorder %s18, 0
      %p112 = por %p110, %p111
      %p113 = scmp.ne.s32.totalorder %s99, %s100
      %p114 = scmp.eq.s32.totalorder %s19, 1
      %p115 = por %p113, %p114
      %p117 = scmp.ne.s32.totalorder %s100, %s116
      %p118 = scmp.eq.s32.totalorder %s19, 0
      %p119 = por %p117, %p118
      %p120 = scmp.le.s32.totalorder 1, %s13
      %p121 = scmp.lt.s32.totalorder %s13, 3
      %p122 = pnand %p120, %p121
      %p123 = pneg %p122
      // Predicated region
      $region9: #{tpu_custom_call.1} parent=5 // pred_check
        _
      $region10: #{tpu_custom_call.1} parent=5 // pred_check_branch
        %125 = sbr.rel (%p122) target = $region12
      $region11: #{tpu_custom_call.1} parent=5 // pred_region
        %s126 = ssub.s32 %s13, 1
        // Predicated region
        $region13: #{tpu_custom_call.1} parent=11 // pred_check
          %p127 = pneg %p34
        $region14: #{tpu_custom_call.1} parent=11 // pred_check_branch
          %129 = sbr.rel (%p127) target = $region16
        $region15: #{tpu_custom_call.1} parent=11 // pred_region
          _
        $region16: #{tpu_custom_call.1} parent=11 // pred_fallthru
          _
      $region12: #{tpu_custom_call.1} parent=5 // pred_fallthru
        _
      %p130 = scmp.lt.s32.totalorder %s13, 2
      // Predicated region
      $region17: #{tpu_custom_call.1} parent=5 // pred_check
        %p131 = pneg %p130
      $region18: #{tpu_custom_call.1} parent=5 // pred_check_branch
        %133 = sbr.rel (%p131) target = $region20
      $region19: #{tpu_custom_call.1} parent=5 // pred_region
        // Predicated region
        $region21: #{tpu_custom_call.1} parent=19 // pred_check
          %p134 = pneg %p54
        $region22: #{tpu_custom_call.1} parent=19 // pred_check_branch
          %136 = sbr.rel (%p134) target = $region24
        $region23: #{tpu_custom_call.1} parent=19 // pred_region
          %s137 = smul.u32 4, %s13
          %p138 = scmp.lt.s32.totalorder %s137, 7
          %s139 = scalar_select %p138, %s137, 7
          %s140 = smul.addr %s139, 2
          %s141 = scalar_lea.vmem %s1, %s140
          %s142 = smul.u32 4, %s13
        $region24: #{tpu_custom_call.1} parent=19 // pred_fallthru
          _
        // Predicated region
        $region25: #{tpu_custom_call.1} parent=19 // pred_check
          %p143 = pneg %p80
        $region26: #{tpu_custom_call.1} parent=19 // pred_check_branch
          %145 = sbr.rel (%p143) target = $region28
        $region27: #{tpu_custom_call.1} parent=19 // pred_region
          %s146 = smul.u32 4, %s13
          %p147 = scmp.lt.s32.totalorder %s146, 199
          %s148 = scalar_select %p147, %s146, 199
          %s149 = scalar_lea.vmem %s2, %s148
          %s150 = smul.u32 4, %s13
        $region28: #{tpu_custom_call.1} parent=19 // pred_fallthru
          _
      $region20: #{tpu_custom_call.1} parent=5 // pred_fallthru
        _
      %p151 = scmp.le.s32.totalorder 1, %s13
      %p152 = scmp.lt.s32.totalorder %s13, 3
      %p153 = pnand %p151, %p152
      %p154 = pneg %p153
      // Predicated region
      $region29: #{tpu_custom_call.1} parent=5 // pred_check
        _
      $region30: #{tpu_custom_call.1} parent=5 // pred_check_branch
        %156 = sbr.rel (%p153) target = $region32
      $region31: #{tpu_custom_call.1} parent=5 // pred_region
        %s157 = ssub.s32 %s13, 1
        %p158 = pneg %p34
        %p159 = pneg %p31
        %s160 = smul.u32 4, %s18
        %p161 = scmp.lt.s32.totalorder %s160, 7
        %s162 = scalar_select %p161, %s160, 7
        %s163 = smul.addr %s162, 2
        %s164 = scalar_lea.vmem %s1, %s163
        %p165 = pneg %p60
        %p166 = pneg %p57
        %s167 = smul.u32 4, %s18
        %p168 = scmp.lt.s32.totalorder %s167, 199
        %s169 = scalar_select %p168, %s167, 199
        %s170 = scalar_lea.vmem %s2, %s169
        %p171 = pneg %p86
        %p172 = pneg %p83
        %p173 = pneg %p112
        %p174 = pneg %p109
        %s175 = sand.u32 %s99, 1
        %s176 = scalar_lea.sflag [#allocation4], %s175
        %s177 = sand.u32 %s99, 1
        %s178 = smul.addr %s177, 8
        %s179 = scalar_lea.vmem [#allocation3], %s178
        %s180 = smul.u32 4, %s18
        %p181 = scmp.lt.s32.totalorder %s180, 7
        %s182 = scalar_select %p181, %s180, 7
        %s183 = smul.addr %s182, 2
        %s184 = scalar_lea.vmem %s1, %s183
        %s185 = smul.u32 4, %s18
        %s186 = smul.u32 4, %s18
        %p187 = scmp.lt.s32.totalorder %s186, 199
        %s188 = scalar_select %p187, %s186, 199
        %s189 = scalar_lea.vmem %s2, %s188
        %s190 = smul.u32 4, %s18
        %s191 = smul.u32 4, %s18
        %v192 = vld [vmem:[%s184] sm:$0x3]
        %v193 = vld [vmem:[%s184 + $0x2] sm:$0x3]
        %v194 = vld [vmem:[%s184 + $0x4] sm:$0x3]
        %v195 = vld [vmem:[%s184 + $0x6] sm:$0x3]
        %v196 = vld [vmem:[%s189] sm:$0x1]
        %v197 = vld [vmem:[%s189 + $0x1] sm:$0x1]
        %v198 = vld [vmem:[%s189 + $0x2] sm:$0x1]
        %v199 = vld [vmem:[%s189 + $0x3] sm:$0x1]
        %v204 = vlaneseq
        %v205 = vshrl.u32 %v204, 7
        %v206 = vsub.s32 0, %v205
        %v207 = vrot.slane %v196, %v206
        %v208 = vlaneseq
        %v209 = vshrl.u32 %v208, 7
        %v210 = vsub.s32 0, %v209
        %v211 = vrot.slane %v197, %v210
        %v212 = vlaneseq
        %v213 = vshrl.u32 %v212, 7
        %v214 = vsub.s32 0, %v213
        %v215 = vrot.slane %v198, %v214
        %v216 = vlaneseq
        %v217 = vshrl.u32 %v216, 7
        %v218 = vsub.s32 0, %v217
        %v219 = vrot.slane %v199, %v218
        %v224 = vadd.f32 %v192, %v207
        %v225 = vadd.f32 %v193, %v211
        %v226 = vadd.f32 %v194, %v215
        %v227 = vadd.f32 %v195, %v219
        %vm228 = vcmask 254976
        %229 = vst.msk [vmem:[%s179] sm:$0x3] %vm228, %v224
        %230 = vst.msk [vmem:[%s179 + $0x2] sm:$0x3] %vm228, %v225
        %231 = vst.msk [vmem:[%s179 + $0x4] sm:$0x3] %vm228, %v226
        %232 = vst.msk [vmem:[%s179 + $0x6] sm:$0x3] %vm228, %v227
        %s233 = sand.u32 %s99, 1
        %s234 = scalar_lea.sflag [#allocation4], %s233
        %s235 = sand.u32 %s99, 1
        %s236 = smul.addr %s235, 8
        %s237 = scalar_lea.vmem [#allocation3], %s236
        // Predicated region
        $region33: #{tpu_custom_call.1} parent=31 // pred_check
          %p238 = pneg %p109
        $region34: #{tpu_custom_call.1} parent=31 // pred_check_branch
          %240 = sbr.rel (%p238) target = $region36
        $region35: #{tpu_custom_call.1} parent=31 // pred_region
          %s241 = smul.u32 4, %s18
          %s243 = ssub.s32 128, 128
          %244 = vsyncadd %s234, %s243
          %s245 = smul.addr %s241, 32
          %s246 = scalar_lea.hbm %s3, %s245
          %s247 = sshll.u32 %s237, 4
          %s248 = int_to_ptr.vmem [resolvable:$true] %s247
          %253 = dma.vmem_to_hbm [thread:$0]  %s248, 128, %s246, %s234, 32, 32, 2
        $region36: #{tpu_custom_call.1} parent=31 // pred_fallthru
          _
      $region32: #{tpu_custom_call.1} parent=5 // pred_fallthru
        _
      %p254 = scmp.le.s32.totalorder 2, %s13
      // Predicated region
      $region37: #{tpu_custom_call.1} parent=5 // pred_check
        %p255 = pneg %p254
      $region38: #{tpu_custom_call.1} parent=5 // pred_check_branch
        %257 = sbr.rel (%p255) target = $region40
      $region39: #{tpu_custom_call.1} parent=5 // pred_region
        %s258 = ssub.s32 %s13, 2
        // Predicated region
        $region41: #{tpu_custom_call.1} parent=39 // pred_check
          %p259 = pneg %p115
        $region42: #{tpu_custom_call.1} parent=39 // pred_check_branch
          %261 = sbr.rel (%p259) target = $region44
        $region43: #{tpu_custom_call.1} parent=39 // pred_region
          %s262 = sand.u32 %s100, 1
          %s263 = scalar_lea.sflag [#allocation4], %s262
          %s264 = sand.u32 %s100, 1
          %s265 = smul.addr %s264, 8
          %s266 = scalar_lea.vmem [#allocation3], %s265
          %267 = dma.done %s263, 128
        $region44: #{tpu_custom_call.1} parent=39 // pred_fallthru
          _
      $region40: #{tpu_custom_call.1} parent=5 // pred_fallthru
        _
    $region6: #{tpu_custom_call.1} parent=1 // loop_footer
      %s17 = sadd.s32 1, %s13
    $region7: #{tpu_custom_call.1} parent=1 // loop_footer_branch
      %12 = sbr.rel target = $region3
    $region8: #{tpu_custom_call.1} parent=1 // loop_exit
      _
    %268 = vsyncpa [#allocation4], 1
    %s269 = scalar_lea.sflag [#allocation4], 1
    %270 = vsyncpa %s269, 1

</llo_original>
